<compile_context>
chip_gen: v5e
topology: v5e:2x2
jax: 0.10.0
libtpu: 0.0.40
codegen_flags: <defaults>
</compile_context>

<pallas_src>
from functools import partial

import jax
import jax.numpy as jnp
from jax.experimental import pallas as pl
from jax.experimental.pallas import tpu as pltpu


def _round_up(n, m):
    return -(-n // m) * m


def _choose_row_tile(rows):
    """Row (sublane) tile: multiple of 8, capped at 32."""
    rt = min(32, _round_up(rows, 8))
    return rt, _round_up(rows, rt)


def _choose_tiles(n_out, q):
    """Lane-dense time tile TL (multiple of 128, <= 2048), halo HALO
    (multiple of 128, >= q-1, divides TL) and the number of time tiles T."""
    halo = max(128, _round_up(max(q - 1, 1), 128))
    tl = min(2048, _round_up(n_out, 128))
    tl = max(tl, halo)
    if tl % halo:
        tl = _round_up(tl, halo)
    t = -(-n_out // tl)
    return tl, halo, t


def _choose_sub(tl, rt, rout):
    """Lane sub-tile: multiple of 128 dividing TL, sized so all Rout f32
    accumulators fit in ~24 vregs (no spill)."""
    budget = 24 * 4096                       # bytes of accumulator
    max_sub = max(128, (budget // (rout * rt * 4)) // 128 * 128)
    sub = 128
    for cand in range(min(max_sub, tl), 127, -128):
        if tl % cand == 0:
            sub = cand
            break
    return sub


def _dw_corr_kernel(x_ref, xh_ref, w_ref, o_ref, ext_ref, *, taps, sub):
    """Depthwise, stride-1, multi-phase correlation on a (rows x time) tile.

    x_ref:   (Rin, RT, TL)       current time tile (per input phase)
    xh_ref:  (Rin, RT, HALO)     halo: next HALO samples (covers the Q-1 taps)
    w_ref:   (Rout, Rin, RT, Q)  per-row taps
    o_ref:   (Rout, RT, TL)      output tile (per output phase)
    ext_ref: (Rin, RT, TL+HALO)  VMEM scratch: tile ++ halo
    taps:    static ((ri, q, (ro, ...)), ...) — structurally nonzero taps
    sub:     static lane sub-tile (multiple of 128, divides TL)

      o[ro, r, i] = sum_{ri, q} x[ri, r, i + q] * w[ro, ri, r, q]
    """
    Rout = w_ref.shape[0]
    RT = o_ref.shape[1]
    TL = o_ref.shape[-1]

    # Stitch the contiguous extended window once per grid step (both stores
    # are 128-lane aligned).
    ext_ref[:, :, :TL] = x_ref[...]
    ext_ref[:, :, TL:] = xh_ref[...]

    # Hoisted weight load and per-tap column slices (a few vregs, sliced once).
    w = w_ref[...].astype(jnp.float32)
    tap_cols = [(ri, q, tuple((ro, w[ro, ri, :, q][:, None]) for ro in ros))
                for (ri, q, ros) in taps]

    for j in range(TL // sub):               # static: bounds accumulator size
        base = j * sub
        accs = [jnp.zeros((RT, sub), jnp.float32) for _ in range(Rout)]
        for ri, q, cols in tap_cols:         # (ri, q) outer: slice loaded once
            xs = ext_ref[ri, :, base + q:base + q + sub].astype(jnp.float32)
            for ro, wcol in cols:            # ro inner: reuse xs for all phases
                accs[ro] = accs[ro] + xs * wcol
        for ro in range(Rout):
            o_ref[ro, :, base:base + sub] = accs[ro].astype(o_ref.dtype)


def _run_dw_corr(x_phase, w_phase, taps, TL, HALO, T, RT):
    """x_phase: (Rin, Rpad, Mtot), w_phase: (Rout, Rin, Rpad, Q)
       returns  (Rout, Rpad, T*TL)."""
    Rin, Rpad, _ = x_phase.shape
    Rout, _, _, Q = w_phase.shape
    hpt = TL // HALO                         # halo blocks per time tile (static)
    sub = _choose_sub(TL, RT, Rout)
    kernel = partial(_dw_corr_kernel, taps=taps, sub=sub)

    return pl.pallas_call(
        kernel,
        out_shape=jax.ShapeDtypeStruct((Rout, Rpad, T * TL), x_phase.dtype),
        grid=(Rpad // RT, T),
        in_specs=[
            pl.BlockSpec((Rin, RT, TL), lambda r, t: (0, r, t)),
            pl.BlockSpec((Rin, RT, HALO), lambda r, t: (0, r, (t + 1) * hpt)),
            pl.BlockSpec((Rout, Rin, RT, Q), lambda r, t: (0, 0, r, 0)),
        ],
        out_specs=pl.BlockSpec((Rout, RT, TL), lambda r, t: (0, r, t)),
        scratch_shapes=[pltpu.VMEM((Rin, RT, TL + HALO), x_phase.dtype)],
        compiler_params=pltpu.CompilerParams(
            dimension_semantics=("parallel", "parallel"),
            vmem_limit_bytes=32 * 1024 * 1024,
        ),
    )(x_phase, x_phase, w_phase)


@partial(jax.jit, static_argnums=(2, 3))
def filter1d_forward(x, filt, stride, transpose):
    """Filter1D.forward.  x: (B, C, L) f32, filt: (C, 1, K) f32 (depthwise)."""
    B, C, L = x.shape
    K = filt.shape[-1]
    p = K // 2
    s = int(stride)

    rows = B * C
    RT, Rpad = _choose_row_tile(rows)
    xr = x.reshape(rows, L)                       # free: B, C are adjacent dims
    wr = jnp.tile(filt[:, 0, :], (B, 1))          # (rows, K): row b*C+c -> filt[c]

    if not transpose:
        # F.conv1d(stride=s, padding=p, groups=C): input-polyphase, one output.
        out_len = (L - 1) // s + 1
        Q = -(-K // s)                            # ceil(K / s)
        TL, HALO, T = _choose_tiles(out_len, Q)
        Mtot = _round_up(max(T * TL + HALO, -(-(p + L) // s)), 128)

        # x at offset p in a zero slab; split into s input phases with rows on
        # sublanes and time on lanes: (s, Rpad, Mtot).
        # TODO(synk): replace this relayout with in-kernel strided DMA phase split.
        xf = jnp.zeros((Rpad, Mtot * s), x.dtype)
        xf = xf.at[:rows, p:p + L].set(xr)
        x_phase = xf.reshape(Rpad, Mtot, s).transpose(2, 0, 1)

        # w_phase[0, r, row, q] = w[row, q*s + r]
        wq = jnp.zeros((Rpad, Q * s), wr.dtype).at[:rows, :K].set(wr)
        w_phase = wq.reshape(Rpad, Q, s).transpose(2, 0, 1)[None]

        taps = tuple((ri, q, (0,))
                     for ri in range(s) for q in range(Q) if q * s + ri < K)

        out = _run_dw_corr(x_phase, w_phase, taps, TL, HALO, T, RT)
        return out[0, :rows, :out_len].reshape(B, C, out_len)

    # F.conv_transpose1d(stride=s, padding=p, output_padding=s-1, groups=C):
    # output-polyphase — each output phase r is a stride-1 correlation of the
    # raw (un-dilated) x with a flipped phase filter; interleave at the end.
    out_len = L * s
    LP = p // s                                   # left zero-pad of x

    meta = []
    Qc = 0
    for r in range(s):
        rho = (r + p) % s
        d = (r + p) // s
        Qr = -(-(K - rho) // s)
        off = d - Qr + 1 + LP
        Qc = max(Qc, off + Qr)
        meta.append((rho, Qr, off))

    rows_w = []
    for r in range(s):
        rho, Qr, off = meta[r]
        wrp = wr[:, rho::s][:, ::-1]              # (rows, Qr) flipped phase filter
        rows_w.append(jnp.zeros((Rpad, Qc), wr.dtype).at[:rows, off:off + Qr].set(wrp))
    w_phase = jnp.stack(rows_w, axis=0)[:, None]  # (s, 1, Rpad, Qc)

    taps = []
    for q in range(Qc):                           # skip structurally-zero taps
        ros = tuple(r for r in range(s)
                    if meta[r][2] <= q < meta[r][2] + meta[r][1])
        if ros:
            taps.append((0, q, ros))
    taps = tuple(taps)

    TL, HALO, T = _choose_tiles(L, Qc)
    Mtot = _round_up(max(T * TL + HALO, LP + L), 128)
    xf = jnp.zeros((Rpad, Mtot), x.dtype)
    xf = xf.at[:rows, LP:LP + L].set(xr)
    x_phase = xf[None]                            # (1, Rpad, Mtot)

    out = _run_dw_corr(x_phase, w_phase, taps, TL, HALO, T, RT)   # (s, Rpad, T*TL)
    yph = out[:, :rows, :L].reshape(s, B, C, L)
    # TODO(synk): emit an interleaved lane layout from the kernel to drop this pass.
    return yph.transpose(1, 2, 3, 0).reshape(B, C, out_len)


def _ref_forward(x, filt, stride, transpose):
    """Pure-JAX reference matching torch.nn.functional conv semantics."""
    C = x.shape[1]
    K = filt.shape[-1]
    p = K // 2
    dn = ('NCH', 'OIH', 'NCH')
    if transpose:
        return jax.lax.conv_general_dilated(
            x, filt[:, :, ::-1], window_strides=(1,),
            padding=[(p, p + stride - 1)], lhs_dilation=(stride,),
            feature_group_count=C, dimension_numbers=dn)
    return jax.lax.conv_general_dilated(
        x, filt, window_strides=(stride,), padding=[(p, p)],
        feature_group_count=C, dimension_numbers=dn)


if __name__ == "__main__":
    B, C, L = 2, 4, 16
    filter_size = 15

    key = jax.random.PRNGKey(0)
    x = jax.random.normal(key, (B, C, L), dtype=jnp.float32)

    for stride in (1, 2):
        # Deterministic parameter init, exactly as Filter1D.__init__ builds it.
        t = jnp.arange(filter_size) - filter_size // 2
        filt_1d = (jnp.sinc(t / stride) / stride).astype(jnp.float32)
        filt = jnp.broadcast_to(filt_1d[None, None, :], (C, 1, filter_size))

        for transpose in (False, True):
            out = filter1d_forward(x, filt, stride, transpose)
            out = jax.block_until_ready(out)
            ref = _ref_forward(x, filt, stride, transpose)
            expected_len = L * stride if transpose else (L - 1) // stride + 1
            assert out.shape == (B, C, expected_len), (out.shape, stride, transpose)
            err = float(jnp.max(jnp.abs(out - ref)))
            assert err < 1e-4, (err, stride, transpose)

    print("KERNEL_OK")
</pallas_src>

<mosaic_0001>
module attributes {stable_mosaic.version = 11 : i64} {
  func.func @_dw_corr_kernel(%arg0: i32, %arg1: i32, %arg2: memref<1x8x128xf32, #tpu.memory_space<vmem>>, %arg3: memref<1x8x128xf32, #tpu.memory_space<vmem>>, %arg4: memref<1x1x8x15xf32, #tpu.memory_space<vmem>>, %arg5: memref<1x8x128xf32, #tpu.memory_space<vmem>>, %arg6: memref<1x8x256xf32, #tpu.memory_space<vmem>>) attributes {dimension_semantics = [#tpu.dimension_semantics<parallel>, #tpu.dimension_semantics<parallel>], iteration_bounds = array<i64: 1, 1>, scalar_prefetch = 0 : i64, scratch_operands = 1 : i64, tpu.core_type = #tpu.core_type<tc>, window_params = [{transform_indices = @transform_0, window_bounds = array<i64: 1, 8, 128>}, {transform_indices = @transform_1, window_bounds = array<i64: 1, 8, 128>}, {transform_indices = @transform_2, window_bounds = array<i64: 1, 1, 8, 15>}, {transform_indices = @transform_3, window_bounds = array<i64: 1, 8, 128>}]} {
    %c0 = arith.constant 0 : index
    %c0_0 = arith.constant 0 : index
    %c0_1 = arith.constant 0 : index
    %0 = vector.load %arg2[%c0, %c0_0, %c0_1] : memref<1x8x128xf32, #tpu.memory_space<vmem>>, vector<1x8x128xf32>
    %c0_2 = arith.constant 0 : index
    %c0_3 = arith.constant 0 : index
    %c0_4 = arith.constant 0 : index
    %1 = vector.load %arg6[%c0_2, %c0_3, %c0_4] : memref<1x8x256xf32, #tpu.memory_space<vmem>>, vector<1x8x128xf32>
    tpu.vector_store %arg6[%c0_2, %c0_3, %c0_4], %0 {strides = array<i32>} : memref<1x8x256xf32, #tpu.memory_space<vmem>>, vector<1x8x128xf32>,
    %c0_5 = arith.constant 0 : index
    %c0_6 = arith.constant 0 : index
    %c0_7 = arith.constant 0 : index
    %2 = vector.load %arg3[%c0_5, %c0_6, %c0_7] : memref<1x8x128xf32, #tpu.memory_space<vmem>>, vector<1x8x128xf32>
    %c0_8 = arith.constant 0 : index
    %c0_9 = arith.constant 0 : index
    %c128 = arith.constant 128 : index
    %3 = vector.load %arg6[%c0_8, %c0_9, %c128] : memref<1x8x256xf32, #tpu.memory_space<vmem>>, vector<1x8x128xf32>
    tpu.vector_store %arg6[%c0_8, %c0_9, %c128], %2 {strides = array<i32>} : memref<1x8x256xf32, #tpu.memory_space<vmem>>, vector<1x8x128xf32>,
    %c0_10 = arith.constant 0 : index
    %c0_11 = arith.constant 0 : index
    %c0_12 = arith.constant 0 : index
    %c0_13 = arith.constant 0 : index
    %4 = vector.load %arg4[%c0_10, %c0_11, %c0_12, %c0_13] : memref<1x1x8x15xf32, #tpu.memory_space<vmem>>, vector<1x1x8x15xf32>
    %5 = vector.extract_strided_slice %4 {offsets = [0, 0, 0, 0], sizes = [1, 1, 8, 1], strides = [1, 1, 1, 1]} : vector<1x1x8x15xf32> to vector<1x1x8x1xf32>
    %6 = vector.shape_cast %5 : vector<1x1x8x1xf32> to vector<8xf32>
    %7 = vector.shape_cast %6 : vector<8xf32> to vector<8x1xf32>
    %8 = vector.extract_strided_slice %4 {offsets = [0, 0, 0, 1], sizes = [1, 1, 8, 1], strides = [1, 1, 1, 1]} : vector<1x1x8x15xf32> to vector<1x1x8x1xf32>
    %9 = vector.shape_cast %8 : vector<1x1x8x1xf32> to vector<8xf32>
    %10 = vector.shape_cast %9 : vector<8xf32> to vector<8x1xf32>
    %11 = vector.extract_strided_slice %4 {offsets = [0, 0, 0, 2], sizes = [1, 1, 8, 1], strides = [1, 1, 1, 1]} : vector<1x1x8x15xf32> to vector<1x1x8x1xf32>
    %12 = vector.shape_cast %11 : vector<1x1x8x1xf32> to vector<8xf32>
    %13 = vector.shape_cast %12 : vector<8xf32> to vector<8x1xf32>
    %14 = vector.extract_strided_slice %4 {offsets = [0, 0, 0, 3], sizes = [1, 1, 8, 1], strides = [1, 1, 1, 1]} : vector<1x1x8x15xf32> to vector<1x1x8x1xf32>
    %15 = vector.shape_cast %14 : vector<1x1x8x1xf32> to vector<8xf32>
    %16 = vector.shape_cast %15 : vector<8xf32> to vector<8x1xf32>
    %17 = vector.extract_strided_slice %4 {offsets = [0, 0, 0, 4], sizes = [1, 1, 8, 1], strides = [1, 1, 1, 1]} : vector<1x1x8x15xf32> to vector<1x1x8x1xf32>
    %18 = vector.shape_cast %17 : vector<1x1x8x1xf32> to vector<8xf32>
    %19 = vector.shape_cast %18 : vector<8xf32> to vector<8x1xf32>
    %20 = vector.extract_strided_slice %4 {offsets = [0, 0, 0, 5], sizes = [1, 1, 8, 1], strides = [1, 1, 1, 1]} : vector<1x1x8x15xf32> to vector<1x1x8x1xf32>
    %21 = vector.shape_cast %20 : vector<1x1x8x1xf32> to vector<8xf32>
    %22 = vector.shape_cast %21 : vector<8xf32> to vector<8x1xf32>
    %23 = vector.extract_strided_slice %4 {offsets = [0, 0, 0, 6], sizes = [1, 1, 8, 1], strides = [1, 1, 1, 1]} : vector<1x1x8x15xf32> to vector<1x1x8x1xf32>
    %24 = vector.shape_cast %23 : vector<1x1x8x1xf32> to vector<8xf32>
    %25 = vector.shape_cast %24 : vector<8xf32> to vector<8x1xf32>
    %26 = vector.extract_strided_slice %4 {offsets = [0, 0, 0, 7], sizes = [1, 1, 8, 1], strides = [1, 1, 1, 1]} : vector<1x1x8x15xf32> to vector<1x1x8x1xf32>
    %27 = vector.shape_cast %26 : vector<1x1x8x1xf32> to vector<8xf32>
    %28 = vector.shape_cast %27 : vector<8xf32> to vector<8x1xf32>
    %29 = vector.extract_strided_slice %4 {offsets = [0, 0, 0, 8], sizes = [1, 1, 8, 1], strides = [1, 1, 1, 1]} : vector<1x1x8x15xf32> to vector<1x1x8x1xf32>
    %30 = vector.shape_cast %29 : vector<1x1x8x1xf32> to vector<8xf32>
    %31 = vector.shape_cast %30 : vector<8xf32> to vector<8x1xf32>
    %32 = vector.extract_strided_slice %4 {offsets = [0, 0, 0, 9], sizes = [1, 1, 8, 1], strides = [1, 1, 1, 1]} : vector<1x1x8x15xf32> to vector<1x1x8x1xf32>
    %33 = vector.shape_cast %32 : vector<1x1x8x1xf32> to vector<8xf32>
    %34 = vector.shape_cast %33 : vector<8xf32> to vector<8x1xf32>
    %35 = vector.extract_strided_slice %4 {offsets = [0, 0, 0, 10], sizes = [1, 1, 8, 1], strides = [1, 1, 1, 1]} : vector<1x1x8x15xf32> to vector<1x1x8x1xf32>
    %36 = vector.shape_cast %35 : vector<1x1x8x1xf32> to vector<8xf32>
    %37 = vector.shape_cast %36 : vector<8xf32> to vector<8x1xf32>
    %38 = vector.extract_strided_slice %4 {offsets = [0, 0, 0, 11], sizes = [1, 1, 8, 1], strides = [1, 1, 1, 1]} : vector<1x1x8x15xf32> to vector<1x1x8x1xf32>
    %39 = vector.shape_cast %38 : vector<1x1x8x1xf32> to vector<8xf32>
    %40 = vector.shape_cast %39 : vector<8xf32> to vector<8x1xf32>
    %41 = vector.extract_strided_slice %4 {offsets = [0, 0, 0, 12], sizes = [1, 1, 8, 1], strides = [1, 1, 1, 1]} : vector<1x1x8x15xf32> to vector<1x1x8x1xf32>
    %42 = vector.shape_cast %41 : vector<1x1x8x1xf32> to vector<8xf32>
    %43 = vector.shape_cast %42 : vector<8xf32> to vector<8x1xf32>
    %44 = vector.extract_strided_slice %4 {offsets = [0, 0, 0, 13], sizes = [1, 1, 8, 1], strides = [1, 1, 1, 1]} : vector<1x1x8x15xf32> to vector<1x1x8x1xf32>
    %45 = vector.shape_cast %44 : vector<1x1x8x1xf32> to vector<8xf32>
    %46 = vector.shape_cast %45 : vector<8xf32> to vector<8x1xf32>
    %47 = vector.extract_strided_slice %4 {offsets = [0, 0, 0, 14], sizes = [1, 1, 8, 1], strides = [1, 1, 1, 1]} : vector<1x1x8x15xf32> to vector<1x1x8x1xf32>
    %48 = vector.shape_cast %47 : vector<1x1x8x1xf32> to vector<8xf32>
    %49 = vector.shape_cast %48 : vector<8xf32> to vector<8x1xf32>
    %cst = arith.constant 0.000000e+00 : f32
    %50 = vector.broadcast %cst : f32 to vector<8x128xf32>
    %c0_14 = arith.constant 0 : index
    %c0_15 = arith.constant 0 : index
    %c0_16 = arith.constant 0 : index
    %51 = vector.load %arg6[%c0_14, %c0_15, %c0_16] : memref<1x8x256xf32, #tpu.memory_space<vmem>>, vector<1x8x128xf32>
    %52 = vector.shape_cast %51 : vector<1x8x128xf32> to vector<8x128xf32>
    %53 = vector.broadcast %7 : vector<8x1xf32> to vector<8x128xf32>
    %54 = arith.mulf %52, %53 : vector<8x128xf32>
    %55 = arith.addf %50, %54 : vector<8x128xf32>
    %c0_17 = arith.constant 0 : index
    %c0_18 = arith.constant 0 : index
    %c1 = arith.constant 1 : index
    %56 = vector.load %arg6[%c0_17, %c0_18, %c1] : memref<1x8x256xf32, #tpu.memory_space<vmem>>, vector<1x8x128xf32>
    %57 = vector.shape_cast %56 : vector<1x8x128xf32> to vector<8x128xf32>
    %58 = vector.broadcast %10 : vector<8x1xf32> to vector<8x128xf32>
    %59 = arith.mulf %57, %58 : vector<8x128xf32>
    %60 = arith.addf %55, %59 : vector<8x128xf32>
    %c0_19 = arith.constant 0 : index
    %c0_20 = arith.constant 0 : index
    %c2 = arith.constant 2 : index
    %61 = vector.load %arg6[%c0_19, %c0_20, %c2] : memref<1x8x256xf32, #tpu.memory_space<vmem>>, vector<1x8x128xf32>
    %62 = vector.shape_cast %61 : vector<1x8x128xf32> to vector<8x128xf32>
    %63 = vector.broadcast %13 : vector<8x1xf32> to vector<8x128xf32>
    %64 = arith.mulf %62, %63 : vector<8x128xf32>
    %65 = arith.addf %60, %64 : vector<8x128xf32>
    %c0_21 = arith.constant 0 : index
    %c0_22 = arith.constant 0 : index
    %c3 = arith.constant 3 : index
    %66 = vector.load %arg6[%c0_21, %c0_22, %c3] : memref<1x8x256xf32, #tpu.memory_space<vmem>>, vector<1x8x128xf32>
    %67 = vector.shape_cast %66 : vector<1x8x128xf32> to vector<8x128xf32>
    %68 = vector.broadcast %16 : vector<8x1xf32> to vector<8x128xf32>
    %69 = arith.mulf %67, %68 : vector<8x128xf32>
    %70 = arith.addf %65, %69 : vector<8x128xf32>
    %c0_23 = arith.constant 0 : index
    %c0_24 = arith.constant 0 : index
    %c4 = arith.constant 4 : index
    %71 = vector.load %arg6[%c0_23, %c0_24, %c4] : memref<1x8x256xf32, #tpu.memory_space<vmem>>, vector<1x8x128xf32>
    %72 = vector.shape_cast %71 : vector<1x8x128xf32> to vector<8x128xf32>
    %73 = vector.broadcast %19 : vector<8x1xf32> to vector<8x128xf32>
    %74 = arith.mulf %72, %73 : vector<8x128xf32>
    %75 = arith.addf %70, %74 : vector<8x128xf32>
    %c0_25 = arith.constant 0 : index
    %c0_26 = arith.constant 0 : index
    %c5 = arith.constant 5 : index
    %76 = vector.load %arg6[%c0_25, %c0_26, %c5] : memref<1x8x256xf32, #tpu.memory_space<vmem>>, vector<1x8x128xf32>
    %77 = vector.shape_cast %76 : vector<1x8x128xf32> to vector<8x128xf32>
    %78 = vector.broadcast %22 : vector<8x1xf32> to vector<8x128xf32>
    %79 = arith.mulf %77, %78 : vector<8x128xf32>
    %80 = arith.addf %75, %79 : vector<8x128xf32>
    %c0_27 = arith.constant 0 : index
    %c0_28 = arith.constant 0 : index
    %c6 = arith.constant 6 : index
    %81 = vector.load %arg6[%c0_27, %c0_28, %c6] : memref<1x8x256xf32, #tpu.memory_space<vmem>>, vector<1x8x128xf32>
    %82 = vector.shape_cast %81 : vector<1x8x128xf32> to vector<8x128xf32>
    %83 = vector.broadcast %25 : vector<8x1xf32> to vector<8x128xf32>
    %84 = arith.mulf %82, %83 : vector<8x128xf32>
    %85 = arith.addf %80, %84 : vector<8x128xf32>
    %c0_29 = arith.constant 0 : index
    %c0_30 = arith.constant 0 : index
    %c7 = arith.constant 7 : index
    %86 = vector.load %arg6[%c0_29, %c0_30, %c7] : memref<1x8x256xf32, #tpu.memory_space<vmem>>, vector<1x8x128xf32>
    %87 = vector.shape_cast %86 : vector<1x8x128xf32> to vector<8x128xf32>
    %88 = vector.broadcast %28 : vector<8x1xf32> to vector<8x128xf32>
    %89 = arith.mulf %87, %88 : vector<8x128xf32>
    %90 = arith.addf %85, %89 : vector<8x128xf32>
    %c0_31 = arith.constant 0 : index
    %c0_32 = arith.constant 0 : index
    %c8 = arith.constant 8 : index
    %91 = vector.load %arg6[%c0_31, %c0_32, %c8] : memref<1x8x256xf32, #tpu.memory_space<vmem>>, vector<1x8x128xf32>
    %92 = vector.shape_cast %91 : vector<1x8x128xf32> to vector<8x128xf32>
    %93 = vector.broadcast %31 : vector<8x1xf32> to vector<8x128xf32>
    %94 = arith.mulf %92, %93 : vector<8x128xf32>
    %95 = arith.addf %90, %94 : vector<8x128xf32>
    %c0_33 = arith.constant 0 : index
    %c0_34 = arith.constant 0 : index
    %c9 = arith.constant 9 : index
    %96 = vector.load %arg6[%c0_33, %c0_34, %c9] : memref<1x8x256xf32, #tpu.memory_space<vmem>>, vector<1x8x128xf32>
    %97 = vector.shape_cast %96 : vector<1x8x128xf32> to vector<8x128xf32>
    %98 = vector.broadcast %34 : vector<8x1xf32> to vector<8x128xf32>
    %99 = arith.mulf %97, %98 : vector<8x128xf32>
    %100 = arith.addf %95, %99 : vector<8x128xf32>
    %c0_35 = arith.constant 0 : index
    %c0_36 = arith.constant 0 : index
    %c10 = arith.constant 10 : index
    %101 = vector.load %arg6[%c0_35, %c0_36, %c10] : memref<1x8x256xf32, #tpu.memory_space<vmem>>, vector<1x8x128xf32>
    %102 = vector.shape_cast %101 : vector<1x8x128xf32> to vector<8x128xf32>
    %103 = vector.broadcast %37 : vector<8x1xf32> to vector<8x128xf32>
    %104 = arith.mulf %102, %103 : vector<8x128xf32>
    %105 = arith.addf %100, %104 : vector<8x128xf32>
    %c0_37 = arith.constant 0 : index
    %c0_38 = arith.constant 0 : index
    %c11 = arith.constant 11 : index
    %106 = vector.load %arg6[%c0_37, %c0_38, %c11] : memref<1x8x256xf32, #tpu.memory_space<vmem>>, vector<1x8x128xf32>
    %107 = vector.shape_cast %106 : vector<1x8x128xf32> to vector<8x128xf32>
    %108 = vector.broadcast %40 : vector<8x1xf32> to vector<8x128xf32>
    %109 = arith.mulf %107, %108 : vector<8x128xf32>
    %110 = arith.addf %105, %109 : vector<8x128xf32>
    %c0_39 = arith.constant 0 : index
    %c0_40 = arith.constant 0 : index
    %c12 = arith.constant 12 : index
    %111 = vector.load %arg6[%c0_39, %c0_40, %c12] : memref<1x8x256xf32, #tpu.memory_space<vmem>>, vector<1x8x128xf32>
    %112 = vector.shape_cast %111 : vector<1x8x128xf32> to vector<8x128xf32>
    %113 = vector.broadcast %43 : vector<8x1xf32> to vector<8x128xf32>
    %114 = arith.mulf %112, %113 : vector<8x128xf32>
    %115 = arith.addf %110, %114 : vector<8x128xf32>
    %c0_41 = arith.constant 0 : index
    %c0_42 = arith.constant 0 : index
    %c13 = arith.constant 13 : index
    %116 = vector.load %arg6[%c0_41, %c0_42, %c13] : memref<1x8x256xf32, #tpu.memory_space<vmem>>, vector<1x8x128xf32>
    %117 = vector.shape_cast %116 : vector<1x8x128xf32> to vector<8x128xf32>
    %118 = vector.broadcast %46 : vector<8x1xf32> to vector<8x128xf32>
    %119 = arith.mulf %117, %118 : vector<8x128xf32>
    %120 = arith.addf %115, %119 : vector<8x128xf32>
    %c0_43 = arith.constant 0 : index
    %c0_44 = arith.constant 0 : index
    %c14 = arith.constant 14 : index
    %121 = vector.load %arg6[%c0_43, %c0_44, %c14] : memref<1x8x256xf32, #tpu.memory_space<vmem>>, vector<1x8x128xf32>
    %122 = vector.shape_cast %121 : vector<1x8x128xf32> to vector<8x128xf32>
    %123 = vector.broadcast %49 : vector<8x1xf32> to vector<8x128xf32>
    %124 = arith.mulf %122, %123 : vector<8x128xf32>
    %125 = arith.addf %120, %124 : vector<8x128xf32>
    %c0_45 = arith.constant 0 : index
    %c0_46 = arith.constant 0 : index
    %c0_47 = arith.constant 0 : index
    %126 = vector.load %arg5[%c0_45, %c0_46, %c0_47] : memref<1x8x128xf32, #tpu.memory_space<vmem>>, vector<1x8x128xf32>
    %127 = vector.shape_cast %126 : vector<1x8x128xf32> to vector<8x128xf32>
    %128 = vector.shape_cast %125 : vector<8x128xf32> to vector<1x8x128xf32>
    tpu.vector_store %arg5[%c0_45, %c0_46, %c0_47], %128 {strides = array<i32>} : memref<1x8x128xf32, #tpu.memory_space<vmem>>, vector<1x8x128xf32>,
    return
  }
  func.func @transform_0(%arg0: i32, %arg1: i32) -> (i32, i32, i32) {
    %c0_i32 = arith.constant 0 : i32
    %c0_i32_0 = arith.constant 0 : i32
    return %c0_i32, %arg0, %arg1 : i32, i32, i32
  }
  func.func @transform_1(%arg0: i32, %arg1: i32) -> (i32, i32, i32) {
    %c1_i32 = arith.constant 1 : i32
    %0 = arith.addi %arg1, %c1_i32 : i32
    %c1_i32_0 = arith.constant 1 : i32
    %1 = arith.muli %0, %c1_i32_0 : i32
    %c0_i32 = arith.constant 0 : i32
    %c0_i32_1 = arith.constant 0 : i32
    return %c0_i32, %arg0, %1 : i32, i32, i32
  }
  func.func @transform_2(%arg0: i32, %arg1: i32) -> (i32, i32, i32, i32) {
    %c0_i32 = arith.constant 0 : i32
    %c0_i32_0 = arith.constant 0 : i32
    %c0_i32_1 = arith.constant 0 : i32
    %c0_i32_2 = arith.constant 0 : i32
    return %c0_i32, %c0_i32_0, %arg0, %c0_i32_1 : i32, i32, i32, i32
  }
  func.func @transform_3(%arg0: i32, %arg1: i32) -> (i32, i32, i32) {
    %c0_i32 = arith.constant 0 : i32
    %c0_i32_0 = arith.constant 0 : i32
    return %c0_i32, %arg0, %arg1 : i32, i32, i32
  }
}

</mosaic_0001>

<llo_original>
// kernel: filter1d_forward.1
$region0: #{filter1d_forward.1}
  #allocation0 [shape = 'u32[]', space=smem, size = 0x4, offset = 0x4, fixed_abs, tag = 'smem constant byte address 0x4 - core index']
  #allocation1 [shape = 'u32[72,128]{1,0:T(1,128)}', space=vmem, size = 0x9000, scoped, tag = 'internal scratch']
  #allocation2 [shape = 'f32[1,8,256]{2,1,0:T(8,128)}', space=vmem, size = 0x2000, scoped, tag = 'scratch operand']
  %s0 = inlined_call_operand.vmem [shape: f32[1,8,256], index: 0, kind: input, shape index: {}, may-alias: {0,1}]
  %s1 = inlined_call_operand.vmem [shape: f32[1,8,256], index: 1, kind: input, shape index: {}, may-alias: {0,1}]
  %s2 = inlined_call_operand.vmem [shape: f32[1,1,8,15], index: 2, kind: input, shape index: {}]
  %s3 = inlined_call_operand.hbm [shape: f32[1,8,128], index: 3, kind: output, shape index: {}]
  %s4 = sld [smem:[#allocation0]]
  $region22: #{filter1d_forward.1} parent=0
    _
  %s6 = ssub.s32 1, %s4
  %s7 = scalar_select 0, %s6, %s4
  $region1: #{filter1d_forward.1} parent=0
    #allocation3 [shape = 'u8[4096]{0}', space=vmem, size = 0x1000, scoped, tag = 'output window, operand 0, single buffered']
    #allocation4 [shape = 's32[1]{0}', space=sflag, size = 0x4, scoped, tag = 'scoped memory for filter1d_forward.1']
    %8 = vsyncpa [#allocation4], 0
    // Predicated region
    $region2: #{filter1d_forward.1} parent=1 // pred_check
      _
    $region3: #{filter1d_forward.1} parent=1 // pred_check_branch
      %10 = sbr.rel (0) target = $region5
    $region4: #{filter1d_forward.1} parent=1 // pred_region
      _
    $region5: #{filter1d_forward.1} parent=1 // pred_fallthru
      _
    // Predicated region
    $region6: #{filter1d_forward.1} parent=1 // pred_check
      _
    $region7: #{filter1d_forward.1} parent=1 // pred_check_branch
      %12 = sbr.rel (0) target = $region9
    $region8: #{filter1d_forward.1} parent=1 // pred_region
      %s13 = sadd.s32 0, 1
      %p14 = scmp.lt.s32.totalorder %s13, 1
      %s15 = scalar_select %p14, %s13, 1
      %s16 = smul.addr %s15, 8
      %s17 = scalar_lea.vmem %s1, %s16
      %s18 = sadd.s32 0, 1
    $region9: #{filter1d_forward.1} parent=1 // pred_fallthru
      _
    // Predicated region
    $region10: #{filter1d_forward.1} parent=1 // pred_check
      _
    $region11: #{filter1d_forward.1} parent=1 // pred_check_branch
      %20 = sbr.rel (0) target = $region13
    $region12: #{filter1d_forward.1} parent=1 // pred_region
      _
    $region13: #{filter1d_forward.1} parent=1 // pred_fallthru
      _
    %s21 = sadd.s32 0, 1
    %p22 = scmp.lt.s32.totalorder %s21, 1
    %s23 = scalar_select %p22, %s21, 1
    %s24 = smul.addr %s23, 8
    %s25 = scalar_lea.vmem %s1, %s24
    %s26 = sadd.s32 0, 1
    %p27 = scmp.lt.s32.totalorder %s26, 1
    %s28 = scalar_select %p27, %s26, 1
    %s29 = smul.addr %s28, 8
    %s30 = scalar_lea.vmem %s1, %s29
    %s31 = sadd.s32 0, 1
    %v32 = vld [vmem:[%s0] sm:$0xff]
    %33 = vst [vmem:[#allocation2] sm:$0xff] %v32
    %v34 = vld [vmem:[%s30] sm:$0xff]
    %35 = vst [vmem:[#allocation2 + $0x8] sm:$0xff] %v34
    %v36 = vld [vmem:[%s2] sm:$0xff]
    %v37 = vld [vmem:[#allocation2] sm:$0xff]
    %39 = vset.pattern.permute.xlu0 0
    %40 = vperm.xlu0 %39, %v36
    %v41 = vpop.permute.xlu0 %40
    %v43 = vmul.f32 %v37, %v41
    %v44 = vadd.f32 %v43, 0.0
    %v45 = vld [vmem:[#allocation2] sm:$0xff]
    %v46 = vld [vmem:[#allocation2 + $0x8] sm:$0xff]
    %47 = vset.pattern.permute.xlu0 1
    %48 = vperm.xlu0 %47, %v36
    %v49 = vpop.permute.xlu0 %48
    %v51 = vmul.f32 %v45, %v49
    %v52 = vmul.f32 %v46, %v49
    %55 = vrot.lane.b32.xlu0 %v51, 127
    %v56 = vpop.permute.xlu0 %55
    %57 = vrot.lane.b32.xlu0 %v52, 127
    %v58 = vpop.permute.xlu0 %57
    %vm59 = vcmask 1039360
    %v60 = vsel %vm59, %v56, %v58
    %v62 = vadd.f32 %v44, %v60
    %63 = vset.pattern.permute.xlu0 2
    %64 = vperm.xlu0 %63, %v36
    %v65 = vpop.permute.xlu0 %64
    %v67 = vmul.f32 %v45, %v65
    %v68 = vmul.f32 %v46, %v65
    %71 = vrot.lane.b32.xlu0 %v67, 126
    %v72 = vpop.permute.xlu0 %71
    %73 = vrot.lane.b32.xlu0 %v68, 126
    %v74 = vpop.permute.xlu0 %73
    %vm75 = vcmask 1031168
    %v76 = vsel %vm75, %v72, %v74
    %v78 = vadd.f32 %v62, %v76
    %79 = vset.pattern.permute.xlu0 3
    %80 = vperm.xlu0 %79, %v36
    %v81 = vpop.permute.xlu0 %80
    %v83 = vmul.f32 %v45, %v81
    %v84 = vmul.f32 %v46, %v81
    %87 = vrot.lane.b32.xlu0 %v83, 125
    %v88 = vpop.permute.xlu0 %87
    %89 = vrot.lane.b32.xlu0 %v84, 125
    %v90 = vpop.permute.xlu0 %89
    %vm91 = vcmask 1022976
    %v92 = vsel %vm91, %v88, %v90
    %v94 = vadd.f32 %v78, %v92
    %95 = vset.pattern.permute.xlu0 4
    %96 = vperm.xlu0 %95, %v36
    %v97 = vpop.permute.xlu0 %96
    %v99 = vmul.f32 %v45, %v97
    %v100 = vmul.f32 %v46, %v97
    %103 = vrot.lane.b32.xlu0 %v99, 124
    %v104 = vpop.permute.xlu0 %103
    %105 = vrot.lane.b32.xlu0 %v100, 124
    %v106 = vpop.permute.xlu0 %105
    %vm107 = vcmask 1014784
    %v108 = vsel %vm107, %v104, %v106
    %v110 = vadd.f32 %v94, %v108
    %111 = vset.pattern.permute.xlu0 5
    %112 = vperm.xlu0 %111, %v36
    %v113 = vpop.permute.xlu0 %112
    %v115 = vmul.f32 %v45, %v113
    %v116 = vmul.f32 %v46, %v113
    %119 = vrot.lane.b32.xlu0 %v115, 123
    %v120 = vpop.permute.xlu0 %119
    %121 = vrot.lane.b32.xlu0 %v116, 123
    %v122 = vpop.permute.xlu0 %121
    %vm123 = vcmask 1006592
    %v124 = vsel %vm123, %v120, %v122
    %v126 = vadd.f32 %v110, %v124
    %127 = vset.pattern.permute.xlu0 6
    %128 = vperm.xlu0 %127, %v36
    %v129 = vpop.permute.xlu0 %128
    %v131 = vmul.f32 %v45, %v129
    %v132 = vmul.f32 %v46, %v129
    %135 = vrot.lane.b32.xlu0 %v131, 122
    %v136 = vpop.permute.xlu0 %135
    %137 = vrot.lane.b32.xlu0 %v132, 122
    %v138 = vpop.permute.xlu0 %137
    %vm139 = vcmask 998400
    %v140 = vsel %vm139, %v136, %v138
    %v142 = vadd.f32 %v126, %v140
    %143 = vset.pattern.permute.xlu0 7
    %144 = vperm.xlu0 %143, %v36
    %v145 = vpop.permute.xlu0 %144
    %v147 = vmul.f32 %v45, %v145
    %v148 = vmul.f32 %v46, %v145
    %151 = vrot.lane.b32.xlu0 %v147, 121
    %v152 = vpop.permute.xlu0 %151
    %153 = vrot.lane.b32.xlu0 %v148, 121
    %v154 = vpop.permute.xlu0 %153
    %vm155 = vcmask 990208
    %v156 = vsel %vm155, %v152, %v154
    %v158 = vadd.f32 %v142, %v156
    %159 = vset.pattern.permute.xlu0 8
    %160 = vperm.xlu0 %159, %v36
    %v161 = vpop.permute.xlu0 %160
    %v163 = vmul.f32 %v45, %v161
    %v164 = vmul.f32 %v46, %v161
    %167 = vrot.lane.b32.xlu0 %v163, 120
    %v168 = vpop.permute.xlu0 %167
    %169 = vrot.lane.b32.xlu0 %v164, 120
    %v170 = vpop.permute.xlu0 %169
    %vm171 = vcmask 982016
    %v172 = vsel %vm171, %v168, %v170
    %v174 = vadd.f32 %v158, %v172
    %175 = vset.pattern.permute.xlu0 9
    %176 = vperm.xlu0 %175, %v36
    %v177 = vpop.permute.xlu0 %176
    %v179 = vmul.f32 %v45, %v177
    %v180 = vmul.f32 %v46, %v177
    %183 = vrot.lane.b32.xlu0 %v179, 119
    %v184 = vpop.permute.xlu0 %183
    %185 = vrot.lane.b32.xlu0 %v180, 119
    %v186 = vpop.permute.xlu0 %185
    %vm187 = vcmask 973824
    %v188 = vsel %vm187, %v184, %v186
    %v190 = vadd.f32 %v174, %v188
    %191 = vset.pattern.permute.xlu0 10
    %192 = vperm.xlu0 %191, %v36
    %v193 = vpop.permute.xlu0 %192
    %v195 = vmul.f32 %v45, %v193
    %v196 = vmul.f32 %v46, %v193
    %199 = vrot.lane.b32.xlu0 %v195, 118
    %v200 = vpop.permute.xlu0 %199
    %201 = vrot.lane.b32.xlu0 %v196, 118
    %v202 = vpop.permute.xlu0 %201
    %vm203 = vcmask 965632
    %v204 = vsel %vm203, %v200, %v202
    %v206 = vadd.f32 %v190, %v204
    %207 = vset.pattern.permute.xlu0 11
    %208 = vperm.xlu0 %207, %v36
    %v209 = vpop.permute.xlu0 %208
    %v211 = vmul.f32 %v45, %v209
    %v212 = vmul.f32 %v46, %v209
    %215 = vrot.lane.b32.xlu0 %v211, 117
    %v216 = vpop.permute.xlu0 %215
    %217 = vrot.lane.b32.xlu0 %v212, 117
    %v218 = vpop.permute.xlu0 %217
    %vm219 = vcmask 957440
    %v220 = vsel %vm219, %v216, %v218
    %v222 = vadd.f32 %v206, %v220
    %223 = vset.pattern.permute.xlu0 12
    %224 = vperm.xlu0 %223, %v36
    %v225 = vpop.permute.xlu0 %224
    %v227 = vmul.f32 %v45, %v225
    %v228 = vmul.f32 %v46, %v225
    %231 = vrot.lane.b32.xlu0 %v227, 116
    %v232 = vpop.permute.xlu0 %231
    %233 = vrot.lane.b32.xlu0 %v228, 116
    %v234 = vpop.permute.xlu0 %233
    %vm235 = vcmask 949248
    %v236 = vsel %vm235, %v232, %v234
    %v238 = vadd.f32 %v222, %v236
    %239 = vset.pattern.permute.xlu0 13
    %240 = vperm.xlu0 %239, %v36
    %v241 = vpop.permute.xlu0 %240
    %v243 = vmul.f32 %v45, %v241
    %v244 = vmul.f32 %v46, %v241
    %247 = vrot.lane.b32.xlu0 %v243, 115
    %v248 = vpop.permute.xlu0 %247
    %249 = vrot.lane.b32.xlu0 %v244, 115
    %v250 = vpop.permute.xlu0 %249
    %vm251 = vcmask 941056
    %v252 = vsel %vm251, %v248, %v250
    %v254 = vadd.f32 %v238, %v252
    %255 = vset.pattern.permute.xlu0 14
    %256 = vperm.xlu0 %255, %v36
    %v257 = vpop.permute.xlu0 %256
    %v259 = vmul.f32 %v45, %v257
    %v260 = vmul.f32 %v46, %v257
    %263 = vrot.lane.b32.xlu0 %v259, 114
    %v264 = vpop.permute.xlu0 %263
    %265 = vrot.lane.b32.xlu0 %v260, 114
    %v266 = vpop.permute.xlu0 %265
    %vm267 = vcmask 932864
    %v268 = vsel %vm267, %v264, %v266
    %v270 = vadd.f32 %v254, %v268
    %271 = vst [vmem:[#allocation3] sm:$0xff] %v270
    // Predicated region
    $region14: #{filter1d_forward.1} parent=1 // pred_check
      _
    $region15: #{filter1d_forward.1} parent=1 // pred_check_branch
      %273 = sbr.rel (0) target = $region17
    $region16: #{filter1d_forward.1} parent=1 // pred_region
      %275 = vsyncadd [#allocation4], 0
      %s277 = sshll.u32 [#allocation3], 4
      %s278 = int_to_ptr.vmem [resolvable:$true] %s277
      %s279 = sshll.u32 %s3, 4
      %s280 = int_to_ptr.hbm [resolvable:$true] %s279
      %282 = dma.vmem_to_hbm [thread:$0]  %s278, 128, %s280, [#allocation4]
    $region17: #{filter1d_forward.1} parent=1 // pred_fallthru
      _
    // Predicated region
    $region18: #{filter1d_forward.1} parent=1 // pred_check
      _
    $region19: #{filter1d_forward.1} parent=1 // pred_check_branch
      %284 = sbr.rel (0) target = $region21
    $region20: #{filter1d_forward.1} parent=1 // pred_region
      %286 = dma.done [#allocation4], 128
    $region21: #{filter1d_forward.1} parent=1 // pred_fallthru
      _
    %287 = vsyncpa [#allocation4], 1

</llo_original>
